<compile_context>
chip_gen: v5e
topology: v5e:2x2
jax: 0.10.0
libtpu: 0.0.40
codegen_flags: <defaults>
</compile_context>

<pallas_src>
import functools

import jax
import jax.numpy as jnp
from jax.experimental import pallas as pl
from jax.experimental.pallas import tpu as pltpu


# ----------------------------------------------------------------------------
# Kernel
# ----------------------------------------------------------------------------
def bow_kernel(x_ref, w1_ref, b_ref, w2_ref, o_ref, *, hidden2):
    # Fused first layer: [xv | xh] @ blockdiag(Wv, Wh) + [bv | bh], then ReLU.
    h = jnp.dot(x_ref[...], w1_ref[...], preferred_element_type=jnp.float32)
    h = jnp.maximum(h + b_ref[:, :hidden2], 0.0)

    # Combined head: (concat happened implicitly above) h @ Wc + bc.
    out = jnp.dot(h.astype(w2_ref.dtype), w2_ref[...],
                  preferred_element_type=jnp.float32)
    o_ref[...] = (out + b_ref[:, hidden2:]).astype(o_ref.dtype)


# ----------------------------------------------------------------------------
# Wrapper (jitted; all per-call host work is trivial and fuses under jit)
# ----------------------------------------------------------------------------
@functools.partial(jax.jit, static_argnames=("output_size",))
def bow_forward(x_values, x_headers, kernel_params, *, output_size):
    w1, b_packed, w2 = kernel_params
    B = x_values.shape[0]
    in_tot, hidden2 = w1.shape
    o_pad = w2.shape[1]

    # Single fused input for the block-diagonal first layer, in compute dtype.
    x_cat = jnp.concatenate((x_values, x_headers), axis=1).astype(w1.dtype)

    vmem = pl.BlockSpec(memory_space=pltpu.MemorySpace.VMEM)

    flops = 2 * B * (in_tot * hidden2 + hidden2 * o_pad)
    bytes_accessed = (x_cat.size * x_cat.dtype.itemsize
                      + w1.size * w1.dtype.itemsize
                      + b_packed.size * b_packed.dtype.itemsize
                      + w2.size * w2.dtype.itemsize
                      + B * o_pad * 4)

    out_padded = pl.pallas_call(
        functools.partial(bow_kernel, hidden2=hidden2),
        out_shape=jax.ShapeDtypeStruct((B, o_pad), jnp.float32),
        in_specs=[vmem, vmem, vmem, vmem],
        out_specs=vmem,
        cost_estimate=pl.CostEstimate(flops=flops,
                                      transcendentals=0,
                                      bytes_accessed=bytes_accessed),
    )(x_cat, w1, b_packed, w2)

    # Drop the lane-padding columns (zero weights/bias => exact zeros there).
    return out_padded[:, :output_size]


# ----------------------------------------------------------------------------
# Parameter construction (PyTorch-style init) + one-time kernel layout
# ----------------------------------------------------------------------------
def init_params(key, input_size_values, input_size_headers, hidden_size,
                output_size, *, compute_dtype=jnp.bfloat16, lane=128):
    ks = jax.random.split(key, 6)

    def linear(kw, kb, fan_in, fan_out):
        bound = 1.0 / jnp.sqrt(jnp.float32(fan_in))
        w = jax.random.uniform(kw, (fan_in, fan_out), jnp.float32, -bound, bound)
        b = jax.random.uniform(kb, (fan_out,), jnp.float32, -bound, bound)
        return w, b

    # Weights stored as (in, out): kernel computes x @ W + b (== PyTorch x @ W.T).
    wv, bv = linear(ks[0], ks[1], input_size_values, hidden_size)
    wh, bh = linear(ks[2], ks[3], input_size_headers, hidden_size)
    wc, bc = linear(ks[4], ks[5], hidden_size * 2, output_size)
    raw = (wv, bv, wh, bh, wc, bc)  # f32 originals, for the reference

    in_tot = input_size_values + input_size_headers
    hidden2 = 2 * hidden_size
    o_pad = max(lane, ((output_size + lane - 1) // lane) * lane)

    # Block-diagonal fused first-layer weight (built once, off the hot path).
    w1 = jnp.zeros((in_tot, hidden2), jnp.float32)
    w1 = w1.at[:input_size_values, :hidden_size].set(wv)
    w1 = w1.at[input_size_values:, hidden_size:].set(wh)
    w1 = w1.astype(compute_dtype)

    # Combined-layer weight, zero-padded to a lane-dense output width.
    w2 = jnp.zeros((hidden2, o_pad), jnp.float32)
    w2 = w2.at[:, :output_size].set(wc)
    w2 = w2.astype(compute_dtype)

    # All biases packed into a single f32 row: [bv | bh | bc | 0-pad].
    b_packed = jnp.zeros((1, hidden2 + o_pad), jnp.float32)
    b_packed = b_packed.at[0, :hidden2].set(jnp.concatenate((bv, bh)))
    b_packed = b_packed.at[0, hidden2:hidden2 + output_size].set(bc)

    kernel_params = (w1, b_packed, w2)
    return kernel_params, raw


def bow_reference(x_values, x_headers, raw_params):
    """Plain-JAX f32 reference of the PyTorch forward pass."""
    wv, bv, wh, bh, wc, bc = raw_params
    hv = jnp.maximum(x_values @ wv + bv, 0.0)
    hh = jnp.maximum(x_headers @ wh + bh, 0.0)
    x_combined = jnp.concatenate((hv, hh), axis=1)
    return x_combined @ wc + bc


if __name__ == "__main__":
    B = 8                       # batch
    INPUT_SIZE_VALUES = 128     # bag-of-words vocab for values
    INPUT_SIZE_HEADERS = 64     # bag-of-words vocab for headers
    HIDDEN = 128
    OUTPUT = 32

    key = jax.random.PRNGKey(0)
    k_xv, k_xh, k_p = jax.random.split(key, 3)

    x_values = jax.random.normal(k_xv, (B, INPUT_SIZE_VALUES), jnp.float32)
    x_headers = jax.random.normal(k_xh, (B, INPUT_SIZE_HEADERS), jnp.float32)
    kernel_params, raw_params = init_params(
        k_p, INPUT_SIZE_VALUES, INPUT_SIZE_HEADERS, HIDDEN, OUTPUT)

    out = bow_forward(x_values, x_headers, kernel_params, output_size=OUTPUT)
    out = jax.block_until_ready(out)

    ref = bow_reference(x_values, x_headers, raw_params)
    assert out.shape == (B, OUTPUT)
    # bf16 weights/activations (f32 accumulation) -> relaxed tolerance vs f32 ref.
    assert jnp.allclose(out, ref, atol=3e-2, rtol=3e-2), \
        "Pallas output mismatch vs reference"

    print("KERNEL_OK")
</pallas_src>

<mosaic_0001>
module attributes {stable_mosaic.version = 11 : i64} {
  func.func @bow_kernel(%arg0: memref<8x192xbf16, #tpu.memory_space<vmem>>, %arg1: memref<192x256xbf16, #tpu.memory_space<vmem>>, %arg2: memref<1x384xf32, #tpu.memory_space<vmem>>, %arg3: memref<256x128xbf16, #tpu.memory_space<vmem>>, %arg4: memref<8x128xf32, #tpu.memory_space<vmem>>) attributes {dimension_semantics = [], scalar_prefetch = 0 : i64, scratch_operands = 0 : i64, tpu.core_type = #tpu.core_type<tc>} {
    %c0 = arith.constant 0 : index
    %c0_0 = arith.constant 0 : index
    %0 = vector.load %arg0[%c0, %c0_0] : memref<8x192xbf16, #tpu.memory_space<vmem>>, vector<8x192xbf16>
    %c0_1 = arith.constant 0 : index
    %c0_2 = arith.constant 0 : index
    %1 = vector.load %arg1[%c0_1, %c0_2] : memref<192x256xbf16, #tpu.memory_space<vmem>>, vector<192x256xbf16>
    %cst = arith.constant dense<0.000000e+00> : vector<8x256xf32>
    %2 = tpu.matmul %0, %1, %cst {dimension_numbers = #tpu.dot_dimension_numbers<[1], [0], [0], [1], [0, 0, 1, 1], [], []>} : vector<8x192xbf16>, vector<192x256xbf16>, vector<8x256xf32> -> vector<8x256xf32>
    %c0_3 = arith.constant 0 : index
    %c0_4 = arith.constant 0 : index
    %3 = vector.load %arg2[%c0_3, %c0_4] : memref<1x384xf32, #tpu.memory_space<vmem>>, vector<1x256xf32>
    %4 = vector.broadcast %3 : vector<1x256xf32> to vector<8x256xf32>
    %5 = arith.addf %2, %4 : vector<8x256xf32>
    %cst_5 = arith.constant 0.000000e+00 : f32
    %6 = vector.broadcast %cst_5 : f32 to vector<8x256xf32>
    %7 = arith.maximumf %5, %6 : vector<8x256xf32>
    %8 = arith.truncf %7 : vector<8x256xf32> to vector<8x256xbf16>
    %c0_6 = arith.constant 0 : index
    %c0_7 = arith.constant 0 : index
    %9 = vector.load %arg3[%c0_6, %c0_7] : memref<256x128xbf16, #tpu.memory_space<vmem>>, vector<256x128xbf16>
    %cst_8 = arith.constant dense<0.000000e+00> : vector<8x128xf32>
    %10 = tpu.matmul %8, %9, %cst_8 {dimension_numbers = #tpu.dot_dimension_numbers<[1], [0], [0], [1], [0, 0, 1, 1], [], []>} : vector<8x256xbf16>, vector<256x128xbf16>, vector<8x128xf32> -> vector<8x128xf32>
    %c0_9 = arith.constant 0 : index
    %c256 = arith.constant 256 : index
    %11 = vector.load %arg2[%c0_9, %c256] : memref<1x384xf32, #tpu.memory_space<vmem>>, vector<1x128xf32>
    %12 = vector.broadcast %11 : vector<1x128xf32> to vector<8x128xf32>
    %13 = arith.addf %10, %12 : vector<8x128xf32>
    %c0_10 = arith.constant 0 : index
    %c0_11 = arith.constant 0 : index
    %14 = vector.load %arg4[%c0_10, %c0_11] : memref<8x128xf32, #tpu.memory_space<vmem>>, vector<8x128xf32>
    tpu.vector_store %arg4[%c0_10, %c0_11], %13 {strides = array<i32>} : memref<8x128xf32, #tpu.memory_space<vmem>>, vector<8x128xf32>,
    return
  }
}

</mosaic_0001>

<llo_original>
// kernel: bow_forward.1
$region0: #{bow_forward.1}
  #allocation0 [shape = 'u32[]', space=smem, size = 0x4, offset = 0x4, fixed_abs, tag = 'smem constant byte address 0x4 - core index']
  #allocation1 [shape = 'u32[72,128]{1,0:T(1,128)}', space=vmem, size = 0x9000, scoped, tag = 'internal scratch']
  %s0 = inlined_call_operand.vmem [shape: bf16[8,192], index: 0, kind: input, shape index: {}]
  %s1 = inlined_call_operand.hbm [shape: bf16[192,256], index: 1, kind: input, shape index: {}]
  %s2 = inlined_call_operand.vmem [shape: f32[1,384], index: 2, kind: input, shape index: {}]
  %s3 = inlined_call_operand.hbm [shape: bf16[256,128], index: 3, kind: input, shape index: {}]
  %s4 = inlined_call_operand.hbm [shape: f32[8,128], index: 4, kind: output, shape index: {}]
  %s5 = sld [smem:[#allocation0]]
  $region34: #{bow_forward.1} parent=0
    _
  %s7 = ssub.s32 1, %s5
  %s8 = scalar_select 0, %s7, %s5
  $region1: #{bow_forward.1} parent=0
    #allocation2 [shape = 'u8[98304]{0}', space=vmem, size = 0x18000, scoped, tag = 'input window, operand 1, single buffered']
    #allocation3 [shape = 's32[1]{0}', space=sflag, size = 0x4, scoped, tag = 'scoped memory for bow_forward.1']
    #allocation4 [shape = 's32[1]{0}', space=sflag, size = 0x4, scoped, tag = 'scoped memory for bow_forward.1']
    #allocation5 [shape = 'u8[65536]{0}', space=vmem, size = 0x10000, scoped, tag = 'input window, operand 3, single buffered']
    #allocation6 [shape = 's32[1]{0}', space=sflag, size = 0x4, scoped, tag = 'scoped memory for bow_forward.1']
    #allocation7 [shape = 'u8[4096]{0}', space=vmem, size = 0x1000, scoped, tag = 'output window, operand 0, single buffered']
    %9 = vsyncpa [#allocation3], 0
    %10 = vsyncpa [#allocation6], 0
    %11 = vsyncpa [#allocation4], 0
    // Predicated region
    $region2: #{bow_forward.1} parent=1 // pred_check
      _
    $region3: #{bow_forward.1} parent=1 // pred_check_branch
      %13 = sbr.rel (0) target = $region5
    $region4: #{bow_forward.1} parent=1 // pred_region
      _
    $region5: #{bow_forward.1} parent=1 // pred_fallthru
      _
    // Predicated region
    $region6: #{bow_forward.1} parent=1 // pred_check
      _
    $region7: #{bow_forward.1} parent=1 // pred_check_branch
      %15 = sbr.rel (0) target = $region9
    $region8: #{bow_forward.1} parent=1 // pred_region
      %17 = vsyncadd [#allocation3], 0
      %s18 = sshll.u32 %s1, 4
      %s19 = int_to_ptr.hbm [resolvable:$true] %s18
      %s20 = sshll.u32 [#allocation2], 4
      %s21 = int_to_ptr.vmem [resolvable:$true] %s20
      %26 = dma.hbm_to_vmem [thread:$0]  %s19, 3072, %s21, [#allocation3], 128, 128, 8
    $region9: #{bow_forward.1} parent=1 // pred_fallthru
      _
    // Predicated region
    $region10: #{bow_forward.1} parent=1 // pred_check
      _
    $region11: #{bow_forward.1} parent=1 // pred_check_branch
      %28 = sbr.rel (0) target = $region13
    $region12: #{bow_forward.1} parent=1 // pred_region
      _
    $region13: #{bow_forward.1} parent=1 // pred_fallthru
      _
    // Predicated region
    $region14: #{bow_forward.1} parent=1 // pred_check
      _
    $region15: #{bow_forward.1} parent=1 // pred_check_branch
      %30 = sbr.rel (0) target = $region17
    $region16: #{bow_forward.1} parent=1 // pred_region
      %32 = vsyncadd [#allocation6], 0
      %s33 = sshll.u32 %s3, 4
      %s34 = int_to_ptr.hbm [resolvable:$true] %s33
      %s35 = sshll.u32 [#allocation5], 4
      %s36 = int_to_ptr.vmem [resolvable:$true] %s35
      %41 = dma.hbm_to_vmem [thread:$0]  %s34, 2048, %s36, [#allocation6], 64, 64, 4
    $region17: #{bow_forward.1} parent=1 // pred_fallthru
      _
    // Predicated region
    $region18: #{bow_forward.1} parent=1 // pred_check
      _
    $region19: #{bow_forward.1} parent=1 // pred_check_branch
      %43 = sbr.rel (0) target = $region21
    $region20: #{bow_forward.1} parent=1 // pred_region
      %45 = dma.done [#allocation3], 3072
    $region21: #{bow_forward.1} parent=1 // pred_fallthru
      _
    // Predicated region
    $region22: #{bow_forward.1} parent=1 // pred_check
      _
    $region23: #{bow_forward.1} parent=1 // pred_check_branch
      %47 = sbr.rel (0) target = $region25
    $region24: #{bow_forward.1} parent=1 // pred_region
      %49 = dma.done [#allocation6], 2048
    $region25: #{bow_forward.1} parent=1 // pred_fallthru
      _
    %v51 = vld [vmem:[%s0] sm:$0xff]
    %v52 = vld [vmem:[#allocation2] sm:$0xff]
    %v53 = vld [vmem:[#allocation2 + $0x8] sm:$0xff]
    %v54 = vld [vmem:[#allocation2 + $0x10] sm:$0xff]
    %v55 = vld [vmem:[#allocation2 + $0x18] sm:$0xff]
    %v56 = vld [vmem:[#allocation2 + $0x20] sm:$0xff]
    %v57 = vld [vmem:[#allocation2 + $0x28] sm:$0xff]
    %v58 = vld [vmem:[#allocation2 + $0x30] sm:$0xff]
    %v59 = vld [vmem:[#allocation2 + $0x38] sm:$0xff]
    %v60 = vld [vmem:[#allocation2 + $0x40] sm:$0xff]
    %v61 = vld [vmem:[#allocation2 + $0x48] sm:$0xff]
    %v62 = vld [vmem:[#allocation2 + $0x50] sm:$0xff]
    %v63 = vld [vmem:[#allocation2 + $0x58] sm:$0xff]
    %v64 = vld [vmem:[#allocation2 + $0x60] sm:$0xff]
    %v65 = vld [vmem:[#allocation2 + $0x68] sm:$0xff]
    %v66 = vld [vmem:[#allocation2 + $0x70] sm:$0xff]
    %v67 = vld [vmem:[#allocation2 + $0x78] sm:$0xff]
    %v68 = vld [vmem:[#allocation2 + $0x80] sm:$0xff]
    %v69 = vld [vmem:[#allocation2 + $0x88] sm:$0xff]
    %v70 = vld [vmem:[#allocation2 + $0x90] sm:$0xff]
    %v71 = vld [vmem:[#allocation2 + $0x98] sm:$0xff]
    %v72 = vld [vmem:[#allocation2 + $0xa0] sm:$0xff]
    %v73 = vld [vmem:[#allocation2 + $0xa8] sm:$0xff]
    %v74 = vld [vmem:[#allocation2 + $0xb0] sm:$0xff]
    %v75 = vld [vmem:[#allocation2 + $0xb8] sm:$0xff]
    %v76 = vld [vmem:[%s2] sm:$0x3]
    %v78 = vperm.slane %v76, 0
    %v79 = vperm.slane %v76, 1
    %v83 = vunpack.c.l.b16 %v51
    %v84 = vunpack.c.h.b16 %v51
    %v85 = vpack.c.b16 %v83, %v83
    %v86 = vpack.c.b16 %v84, %v84
    %v112 = vunpack.c.l.b16 %v52
    %v113 = vunpack.c.h.b16 %v52
    %v114 = vunpack.c.l.b16 %v53
    %v115 = vunpack.c.h.b16 %v53
    %v116 = vunpack.c.l.b16 %v54
    %v117 = vunpack.c.h.b16 %v54
    %v118 = vunpack.c.l.b16 %v55
    %v119 = vunpack.c.h.b16 %v55
    %v120 = vunpack.c.l.b16 %v56
    %v121 = vunpack.c.h.b16 %v56
    %v122 = vunpack.c.l.b16 %v57
    %v123 = vunpack.c.h.b16 %v57
    %v124 = vunpack.c.l.b16 %v58
    %v125 = vunpack.c.h.b16 %v58
    %v126 = vunpack.c.l.b16 %v59
    %v127 = vunpack.c.h.b16 %v59
    %v128 = vunpack.c.l.b16 %v60
    %v129 = vunpack.c.h.b16 %v60
    %v130 = vunpack.c.l.b16 %v61
    %v131 = vunpack.c.h.b16 %v61
    %v132 = vunpack.c.l.b16 %v62
    %v133 = vunpack.c.h.b16 %v62
    %v134 = vunpack.c.l.b16 %v63
    %v135 = vunpack.c.h.b16 %v63
    %v136 = vunpack.c.l.b16 %v64
    %v137 = vunpack.c.h.b16 %v64
    %v138 = vunpack.c.l.b16 %v65
    %v139 = vunpack.c.h.b16 %v65
    %v140 = vunpack.c.l.b16 %v66
    %v141 = vunpack.c.h.b16 %v66
    %v142 = vunpack.c.l.b16 %v67
    %v143 = vunpack.c.h.b16 %v67
    %v144 = vunpack.c.l.b16 %v68
    %v145 = vunpack.c.h.b16 %v68
    %v146 = vunpack.c.l.b16 %v69
    %v147 = vunpack.c.h.b16 %v69
    %v148 = vunpack.c.l.b16 %v70
    %v149 = vunpack.c.h.b16 %v70
    %v150 = vunpack.c.l.b16 %v71
    %v151 = vunpack.c.h.b16 %v71
    %v152 = vunpack.c.l.b16 %v72
    %v153 = vunpack.c.h.b16 %v72
    %v154 = vunpack.c.l.b16 %v73
    %v155 = vunpack.c.h.b16 %v73
    %v156 = vunpack.c.l.b16 %v74
    %v157 = vunpack.c.h.b16 %v74
    %v158 = vunpack.c.l.b16 %v75
    %v159 = vunpack.c.h.b16 %v75
    %v160 = vpack.c.b16 %v114, %v112
    %v161 = vpack.c.b16 %v115, %v113
    %v162 = vpack.c.b16 %v118, %v116
    %v163 = vpack.c.b16 %v119, %v117
    %v164 = vpack.c.b16 %v122, %v120
    %v165 = vpack.c.b16 %v123, %v121
    %v166 = vpack.c.b16 %v126, %v124
    %v167 = vpack.c.b16 %v127, %v125
    %v168 = vpack.c.b16 %v130, %v128
    %v169 = vpack.c.b16 %v131, %v129
    %v170 = vpack.c.b16 %v134, %v132
    %v171 = vpack.c.b16 %v135, %v133
    %v172 = vpack.c.b16 %v138, %v136
    %v173 = vpack.c.b16 %v139, %v137
    %v174 = vpack.c.b16 %v142, %v140
    %v175 = vpack.c.b16 %v143, %v141
    %v176 = vpack.c.b16 %v146, %v144
    %v177 = vpack.c.b16 %v147, %v145
    %v178 = vpack.c.b16 %v150, %v148
    %v179 = vpack.c.b16 %v151, %v149
    %v180 = vpack.c.b16 %v154, %v152
    %v181 = vpack.c.b16 %v155, %v153
    %v182 = vpack.c.b16 %v158, %v156
    %v183 = vpack.c.b16 %v159, %v157
    %vm208 = vcmask 523264
    %v210 = vsel %vm208, %v86, 0
    %212 = vmatpush.bf16.msra.mxu0 %v174
    %213 = vmatpush.bf16.msra.mxu0 %v172
    %214 = vmatpush.bf16.msra.mxu0 %v170
    %215 = vmatpush.bf16.msra.mxu0 %v168
    %216 = vmatpush.bf16.msra.mxu0 %v166
    %217 = vmatpush.bf16.msra.mxu0 %v164
    %218 = vmatpush.bf16.msra.mxu0 %v162
    %219 = vmatpush.bf16.msra.mxu0 %v160
    %220 = vmatmul.bf16.gmra.mxu0 %v85
    %v221 = vpop.f32.mrf.mxu0
    %v222 = vadd.f32 %v78, %v221
    %v223 = vpop.f32.mrf.mxu0
    %224 = vdwg.mxu0
    %225 = vmatpush.bf16.msra.mxu0 0
    %226 = vmatpush.bf16.msra.mxu0 0
    %227 = vmatpush.bf16.msra.mxu0 0
    %228 = vmatpush.bf16.msra.mxu0 0
    %229 = vmatpush.bf16.msra.mxu0 %v182
    %230 = vmatpush.bf16.msra.mxu0 %v180
    %231 = vmatpush.bf16.msra.mxu0 %v178
    %232 = vmatpush.bf16.msra.mxu0 %v176
    %233 = vmatmul.bf16.gmra.mxu0 %v210
    %v234 = vpop.f32.mrf.mxu0
    %v235 = vadd.f32 %v222, %v234
    %v236 = vpop.f32.mrf.mxu0
    %237 = vdwg.mxu0
    %238 = vmatpush.bf16.msra.mxu0 %v175
    %239 = vmatpush.bf16.msra.mxu0 %v173
    %240 = vmatpush.bf16.msra.mxu0 %v171
    %241 = vmatpush.bf16.msra.mxu0 %v169
    %242 = vmatpush.bf16.msra.mxu0 %v167
    %243 = vmatpush.bf16.msra.mxu0 %v165
    %244 = vmatpush.bf16.msra.mxu0 %v163
    %245 = vmatpush.bf16.msra.mxu0 %v161
    %246 = vmatmul.bf16.gmra.mxu0 %v85
    %v247 = vpop.f32.mrf.mxu0
    %v248 = vadd.f32 %v79, %v247
    %v249 = vpop.f32.mrf.mxu0
    %250 = vdwg.mxu0
    %251 = vmatpush.bf16.msra.mxu0 0
    %252 = vmatpush.bf16.msra.mxu0 0
    %253 = vmatpush.bf16.msra.mxu0 0
    %254 = vmatpush.bf16.msra.mxu0 0
    %255 = vmatpush.bf16.msra.mxu0 %v183
    %256 = vmatpush.bf16.msra.mxu0 %v181
    %257 = vmatpush.bf16.msra.mxu0 %v179
    %258 = vmatpush.bf16.msra.mxu0 %v177
    %259 = vmatmul.bf16.gmra.mxu0 %v210
    %v260 = vpop.f32.mrf.mxu0
    %v261 = vadd.f32 %v248, %v260
    %v262 = vpop.f32.mrf.mxu0
    %263 = vdwg.mxu0
    %v264 = vmax.f32 %v235, 0.0
    %v265 = vmax.f32 %v261, 0.0
    %v266 = vpack.c.bf16 %v264, %v264
    %v267 = vpack.c.bf16 %v265, %v265
    %v268 = vld [vmem:[#allocation5] sm:$0xf]
    %v269 = vld [vmem:[#allocation5 + $0x4] sm:$0xf]
    %v270 = vld [vmem:[#allocation5 + $0x8] sm:$0xf]
    %v271 = vld [vmem:[#allocation5 + $0xc] sm:$0xf]
    %v272 = vld [vmem:[#allocation5 + $0x10] sm:$0xf]
    %v273 = vld [vmem:[#allocation5 + $0x14] sm:$0xf]
    %v274 = vld [vmem:[#allocation5 + $0x18] sm:$0xf]
    %v275 = vld [vmem:[#allocation5 + $0x1c] sm:$0xf]
    %v276 = vld [vmem:[#allocation5 + $0x20] sm:$0xf]
    %v277 = vld [vmem:[#allocation5 + $0x24] sm:$0xf]
    %v278 = vld [vmem:[#allocation5 + $0x28] sm:$0xf]
    %v279 = vld [vmem:[#allocation5 + $0x2c] sm:$0xf]
    %v280 = vld [vmem:[#allocation5 + $0x30] sm:$0xf]
    %v281 = vld [vmem:[#allocation5 + $0x34] sm:$0xf]
    %v282 = vld [vmem:[#allocation5 + $0x38] sm:$0xf]
    %v283 = vld [vmem:[#allocation5 + $0x3c] sm:$0xf]
    %v284 = vld [vmem:[#allocation5 + $0x40] sm:$0xf]
    %v285 = vld [vmem:[#allocation5 + $0x44] sm:$0xf]
    %v286 = vld [vmem:[#allocation5 + $0x48] sm:$0xf]
    %v287 = vld [vmem:[#allocation5 + $0x4c] sm:$0xf]
    %v288 = vld [vmem:[#allocation5 + $0x50] sm:$0xf]
    %v289 = vld [vmem:[#allocation5 + $0x54] sm:$0xf]
    %v290 = vld [vmem:[#allocation5 + $0x58] sm:$0xf]
    %v291 = vld [vmem:[#allocation5 + $0x5c] sm:$0xf]
    %v292 = vld [vmem:[#allocation5 + $0x60] sm:$0xf]
    %v293 = vld [vmem:[#allocation5 + $0x64] sm:$0xf]
    %v294 = vld [vmem:[#allocation5 + $0x68] sm:$0xf]
    %v295 = vld [vmem:[#allocation5 + $0x6c] sm:$0xf]
    %v296 = vld [vmem:[#allocation5 + $0x70] sm:$0xf]
    %v297 = vld [vmem:[#allocation5 + $0x74] sm:$0xf]
    %v298 = vld [vmem:[#allocation5 + $0x78] sm:$0xf]
    %v299 = vld [vmem:[#allocation5 + $0x7c] sm:$0xf]
    %v300 = vld [vmem:[%s2 + $0x2] sm:$0x1]
    %v302 = vperm.slane %v300, 0
    %v336 = vunpack.c.l.b16 %v268
    %v337 = vunpack.c.l.b16 %v269
    %v338 = vunpack.c.l.b16 %v270
    %v339 = vunpack.c.l.b16 %v271
    %v340 = vunpack.c.l.b16 %v272
    %v341 = vunpack.c.l.b16 %v273
    %v342 = vunpack.c.l.b16 %v274
    %v343 = vunpack.c.l.b16 %v275
    %v344 = vunpack.c.l.b16 %v276
    %v345 = vunpack.c.l.b16 %v277
    %v346 = vunpack.c.l.b16 %v278
    %v347 = vunpack.c.l.b16 %v279
    %v348 = vunpack.c.l.b16 %v280
    %v349 = vunpack.c.l.b16 %v281
    %v350 = vunpack.c.l.b16 %v282
    %v351 = vunpack.c.l.b16 %v283
    %v352 = vunpack.c.l.b16 %v284
    %v353 = vunpack.c.l.b16 %v285
    %v354 = vunpack.c.l.b16 %v286
    %v355 = vunpack.c.l.b16 %v287
    %v356 = vunpack.c.l.b16 %v288
    %v357 = vunpack.c.l.b16 %v289
    %v358 = vunpack.c.l.b16 %v290
    %v359 = vunpack.c.l.b16 %v291
    %v360 = vunpack.c.l.b16 %v292
    %v361 = vunpack.c.l.b16 %v293
    %v362 = vunpack.c.l.b16 %v294
    %v363 = vunpack.c.l.b16 %v295
    %v364 = vunpack.c.l.b16 %v296
    %v365 = vunpack.c.l.b16 %v297
    %v366 = vunpack.c.l.b16 %v298
    %v367 = vunpack.c.l.b16 %v299
    %v368 = vpack.c.b16 %v337, %v336
    %v369 = vpack.c.b16 %v339, %v338
    %v370 = vpack.c.b16 %v341, %v340
    %v371 = vpack.c.b16 %v343, %v342
    %v372 = vpack.c.b16 %v345, %v344
    %v373 = vpack.c.b16 %v347, %v346
    %v374 = vpack.c.b16 %v349, %v348
    %v375 = vpack.c.b16 %v351, %v350
    %v376 = vpack.c.b16 %v353, %v352
    %v377 = vpack.c.b16 %v355, %v354
    %v378 = vpack.c.b16 %v357, %v356
    %v379 = vpack.c.b16 %v359, %v358
    %v380 = vpack.c.b16 %v361, %v360
    %v381 = vpack.c.b16 %v363, %v362
    %v382 = vpack.c.b16 %v365, %v364
    %v383 = vpack.c.b16 %v367, %v366
    %400 = vmatpush.bf16.msra.mxu0 %v375
    %401 = vmatpush.bf16.msra.mxu0 %v374
    %402 = vmatpush.bf16.msra.mxu0 %v373
    %403 = vmatpush.bf16.msra.mxu0 %v372
    %404 = vmatpush.bf16.msra.mxu0 %v371
    %405 = vmatpush.bf16.msra.mxu0 %v370
    %406 = vmatpush.bf16.msra.mxu0 %v369
    %407 = vmatpush.bf16.msra.mxu0 %v368
    %408 = vmatmul.bf16.gmra.mxu0 %v266
    %v409 = vpop.f32.mrf.mxu0
    %v410 = vadd.f32 %v302, %v409
    %v411 = vpop.f32.mrf.mxu0
    %412 = vdwg.mxu0
    %413 = vmatpush.bf16.msra.mxu0 %v383
    %414 = vmatpush.bf16.msra.mxu0 %v382
    %415 = vmatpush.bf16.msra.mxu0 %v381
    %416 = vmatpush.bf16.msra.mxu0 %v380
    %417 = vmatpush.bf16.msra.mxu0 %v379
    %418 = vmatpush.bf16.msra.mxu0 %v378
    %419 = vmatpush.bf16.msra.mxu0 %v377
    %420 = vmatpush.bf16.msra.mxu0 %v376
    %421 = vmatmul.bf16.gmra.mxu0 %v267
    %v422 = vpop.f32.mrf.mxu0
    %v423 = vadd.f32 %v410, %v422
    %v424 = vpop.f32.mrf.mxu0
    %425 = vdwg.mxu0
    %426 = vst [vmem:[#allocation7] sm:$0xff] %v423
    // Predicated region
    $region26: #{bow_forward.1} parent=1 // pred_check
      _
    $region27: #{bow_forward.1} parent=1 // pred_check_branch
      %428 = sbr.rel (0) target = $region29
    $region28: #{bow_forward.1} parent=1 // pred_region
      %430 = vsyncadd [#allocation4], 0
      %s432 = sshll.u32 [#allocation7], 4
      %s433 = int_to_ptr.vmem [resolvable:$true] %s432
      %s434 = sshll.u32 %s4, 4
      %s435 = int_to_ptr.hbm [resolvable:$true] %s434
      %437 = dma.vmem_to_hbm [thread:$0]  %s433, 128, %s435, [#allocation4]
    $region29: #{bow_forward.1} parent=1 // pred_fallthru
      _
    // Predicated region
    $region30: #{bow_forward.1} parent=1 // pred_check
      _
    $region31: #{bow_forward.1} parent=1 // pred_check_branch
      %439 = sbr.rel (0) target = $region33
    $region32: #{bow_forward.1} parent=1 // pred_region
      %441 = dma.done [#allocation4], 128
    $region33: #{bow_forward.1} parent=1 // pred_fallthru
      _
    %442 = vsyncpa [#allocation3], 1
    %443 = vsyncpa [#allocation6], 1
    %444 = vsyncpa [#allocation4], 1

</llo_original>
